<compile_context>
chip_gen: v7x
topology: tpu7x:2x2x1
jax: 0.10.0
libtpu: 0.0.40
codegen_flags: <defaults>
</compile_context>

<pallas_src>
import functools

import jax
import jax.numpy as jnp
from jax import lax
from jax.experimental import pallas as pl
from jax.experimental.pallas import tpu as pltpu


_NEG = -1e30  # inert filler for masked (padded) vocab columns


def _round_up(x, m):
    return (x + m - 1) // m * m


# ---------------------------------------------------------------------------
# Capability probe: single-buffered (non-double-buffered) resident table.
# ---------------------------------------------------------------------------
@functools.lru_cache(maxsize=None)
def _single_buffer_table_supported():
    """True iff pipeline_mode=pl.Buffered(1) compiles, runs and is correct for a
    constant-index_map input (the resident-table pattern used below)."""
    try:
        def probe_kernel(x_ref, o_ref):
            o_ref[...] = x_ref[...] + pl.program_id(0).astype(jnp.float32)

        x = jnp.arange(8 * 128, dtype=jnp.float32).reshape(8, 128)
        out = pl.pallas_call(
            probe_kernel,
            grid=(2,),
            in_specs=[pl.BlockSpec((8, 128), lambda i: (0, 0),
                                   pipeline_mode=pl.Buffered(1))],
            out_specs=pl.BlockSpec((8, 128), lambda i: (i, 0)),
            out_shape=jax.ShapeDtypeStruct((16, 128), jnp.float32),
        )(x)
        expected = jnp.concatenate([x, x + 1.0], axis=0)
        return bool(jnp.allclose(out, expected))
    except Exception:  # any construction / lowering / runtime failure -> fallback
        return False


def _table_spec(v_pad, single_buffer):
    """Constant-index (VMEM-resident) table spec; single-buffered when supported."""
    if single_buffer:
        return pl.BlockSpec((v_pad, v_pad), lambda i: (0, 0),
                            pipeline_mode=pl.Buffered(1))
    return pl.BlockSpec((v_pad, v_pad), lambda i: (0, 0))


def _vmem_limit_bytes(tm, v_pad, table_bufs):
    """Generous scoped-VMEM budget: resident table + double-buffered IO + temps."""
    table = table_bufs * v_pad * v_pad * 4
    idx_tgt = 2 * 2 * tm * 128 * 4          # (TM,1) i32 blocks lane-pad to 128, x2 bufs
    logits = 2 * tm * v_pad * 4             # double-buffered logits tiles
    loss = 2 * 8 * 128 * 4                  # double-buffered loss tiles (padded)
    temps = 8 * tm * v_pad * 4              # one-hot / masked / exp temporaries + spills
    est = table + idx_tgt + logits + loss + temps + (4 << 20)
    # Never below the v6e/v7x default (32 MiB), never above v7x physical (64 MiB).
    return int(min(max(est, 32 << 20), 64 << 20))


def _pick_tm(n, v_pad):
    cap = 512 if v_pad <= 1024 else 128
    return min(cap, _round_up(n, 8))


# ---------------------------------------------------------------------------
# Kernels
# ---------------------------------------------------------------------------
def _logits_kernel(idx_ref, emb_ref, logits_ref):
    """Inference path: one-hot MXU gather of TM table rows (exact selection)."""
    tm, v_pad = logits_ref.shape
    col = lax.broadcasted_iota(jnp.int32, (tm, v_pad), 1)
    onehot = (col == idx_ref[...]).astype(jnp.float32)
    logits_ref[...] = jnp.dot(onehot, emb_ref[...],
                              preferred_element_type=jnp.float32)


def _logits_loss_kernel(idx_ref, tgt_ref, emb_ref, logits_ref, loss_ref, *,
                        valid_cols):
    """Training path: gather + per-row cross entropy for a TM-row tile."""
    tm, v_pad = logits_ref.shape
    # Column iota built once and reused for one-hot, target mask and pad mask.
    col = lax.broadcasted_iota(jnp.int32, (tm, v_pad), 1)

    onehot = (col == idx_ref[...]).astype(jnp.float32)
    logits = jnp.dot(onehot, emb_ref[...], preferred_element_type=jnp.float32)
    logits_ref[...] = logits                                   # lane-dense f32 slab

    # Mask zero-padded vocab columns (exp underflows to exactly 0 under -1e30).
    if valid_cols < v_pad:
        logits_sm = jnp.where(col < valid_cols, logits, jnp.float32(_NEG))
    else:
        logits_sm = logits

    m = jnp.max(logits_sm, axis=-1, keepdims=True)                               # (TM,1)
    lse = jnp.log(jnp.sum(jnp.exp(logits_sm - m), axis=-1, keepdims=True)) + m   # (TM,1)

    tgt_logit = jnp.sum(jnp.where(col == tgt_ref[...], logits, 0.0),
                        axis=-1, keepdims=True)                                  # (TM,1)

    loss_ref[...] = lse - tgt_logit            # per-row CE; masked/averaged in wrapper


# ---------------------------------------------------------------------------
# pallas_call wrappers
# ---------------------------------------------------------------------------
@functools.partial(jax.jit, static_argnames=("tm", "single_buffer"))
def _ilm_logits(idx2d, table_pad, *, tm, single_buffer):
    n_pad = idx2d.shape[0]
    v_pad = table_pad.shape[1]
    table_bufs = 1 if single_buffer else 2
    grid_spec = pltpu.PrefetchScalarGridSpec(
        num_scalar_prefetch=0,
        grid=(n_pad // tm,),
        in_specs=[
            pl.BlockSpec((tm, 1), lambda i: (i, 0)),          # idx tile
            _table_spec(v_pad, single_buffer),                 # resident table
        ],
        out_specs=pl.BlockSpec((tm, v_pad), lambda i: (i, 0)),
    )
    return pl.pallas_call(
        _logits_kernel,
        grid_spec=grid_spec,
        out_shape=jax.ShapeDtypeStruct((n_pad, v_pad), jnp.float32),
        compiler_params=pltpu.CompilerParams(
            dimension_semantics=("parallel",),
            vmem_limit_bytes=_vmem_limit_bytes(tm, v_pad, table_bufs)),
    )(idx2d, table_pad)


@functools.partial(jax.jit, static_argnames=("tm", "valid_cols", "single_buffer"))
def _ilm_logits_loss(idx2d, tgt2d, table_pad, *, tm, valid_cols, single_buffer):
    n_pad = idx2d.shape[0]
    v_pad = table_pad.shape[1]
    table_bufs = 1 if single_buffer else 2
    grid_spec = pltpu.PrefetchScalarGridSpec(
        num_scalar_prefetch=0,
        grid=(n_pad // tm,),
        in_specs=[
            pl.BlockSpec((tm, 1), lambda i: (i, 0)),          # idx tile
            pl.BlockSpec((tm, 1), lambda i: (i, 0)),          # target tile
            _table_spec(v_pad, single_buffer),                 # resident table
        ],
        out_specs=[
            pl.BlockSpec((tm, v_pad), lambda i: (i, 0)),      # lane-dense logits slab
            pl.BlockSpec((tm, 1), lambda i: (i, 0)),          # per-row losses
        ],
    )
    return pl.pallas_call(
        functools.partial(_logits_loss_kernel, valid_cols=valid_cols),
        grid_spec=grid_spec,
        out_shape=(
            jax.ShapeDtypeStruct((n_pad, v_pad), jnp.float32),
            jax.ShapeDtypeStruct((n_pad, 1), jnp.float32),
        ),
        compiler_params=pltpu.CompilerParams(
            dimension_semantics=("parallel",),
            vmem_limit_bytes=_vmem_limit_bytes(tm, v_pad, table_bufs)),
    )(idx2d, tgt2d, table_pad)


# ---------------------------------------------------------------------------
# Model wrapper (mirrors the nn.Module; pads the table ONCE at construction)
# ---------------------------------------------------------------------------
class PallasILM:
    def __init__(self, emb_table):
        emb_table = jnp.asarray(emb_table, jnp.float32)
        self.vocab_size = int(emb_table.shape[1])
        self.v_pad = _round_up(self.vocab_size, 128)
        # Zero padding (exact under the one-hot gather); pad columns are masked
        # to -1e30 in-kernel only where the softmax needs it.
        self.table_pad = (
            jnp.zeros((self.v_pad, self.v_pad), jnp.float32)
            .at[:emb_table.shape[0], :self.vocab_size].set(emb_table)
        )
        self._single_buf = _single_buffer_table_supported()

    def __call__(self, idx, targets=None):
        """Matches IntuinisticLanguageModel.forward.

        idx     : (B, T) int32
        targets : optional (B, T) int32
        Returns:
          - targets is None:  (logits (B, T, V), None)
          - else:             (logits (B*T, V),  scalar loss)
        """
        B, T = idx.shape
        V = self.vocab_size
        N = B * T

        TM = _pick_tm(N, self.v_pad)
        N_pad = _round_up(N, TM)

        idx_flat = jnp.asarray(idx, jnp.int32).reshape(N)
        idx2d = jnp.zeros((N_pad, 1), jnp.int32).at[:N, 0].set(idx_flat)

        if targets is None:
            logits_pad = _ilm_logits(idx2d, self.table_pad, tm=TM,
                                     single_buffer=self._single_buf)
            return logits_pad[:N, :V].reshape(B, T, V), None

        tgt_flat = jnp.asarray(targets, jnp.int32).reshape(N)
        tgt2d = jnp.zeros((N_pad, 1), jnp.int32).at[:N, 0].set(tgt_flat)

        logits_pad, loss_rows = _ilm_logits_loss(
            idx2d, tgt2d, self.table_pad, tm=TM, valid_cols=V,
            single_buffer=self._single_buf)
        loss = jnp.sum(loss_rows[:N, 0]) / N      # mean over the B*T valid rows
        return logits_pad[:N, :V], loss


# ---------------------------------------------------------------------------
# Pure-JAX reference + self-test
# ---------------------------------------------------------------------------
def _reference(emb_table, idx, targets):
    logits = emb_table[idx]                              # (B, T, V)
    B, T, V = logits.shape
    lf = logits.reshape(B * T, V)
    tf = targets.reshape(B * T)
    lse = jax.nn.logsumexp(lf, axis=-1)
    tgt_logit = jnp.take_along_axis(lf, tf[:, None], axis=-1)[:, 0]
    loss = jnp.mean(lse - tgt_logit)
    return lf, loss


if __name__ == "__main__":
    vocab_size = 64
    B, T = 2, 8

    key = jax.random.PRNGKey(0)
    k_emb, k_idx, k_tgt = jax.random.split(key, 3)

    # nn.Embedding default init is N(0, 1)
    emb_table = jax.random.normal(k_emb, (vocab_size, vocab_size), dtype=jnp.float32)
    idx = jax.random.randint(k_idx, (B, T), 0, vocab_size, dtype=jnp.int32)
    targets = jax.random.randint(k_tgt, (B, T), 0, vocab_size, dtype=jnp.int32)

    model = PallasILM(emb_table)   # table padded once here (hoisted per perf review)

    # targets given -> (logits (B*T, V), scalar loss)
    logits, loss = model(idx, targets)
    jax.block_until_ready((logits, loss))

    # targets=None -> (logits (B, T, V), None)
    logits_nl, loss_nl = model(idx, None)
    jax.block_until_ready(logits_nl)
    assert loss_nl is None and logits_nl.shape == (B, T, vocab_size)

    # correctness check against pure-JAX reference
    ref_logits, ref_loss = _reference(emb_table, idx, targets)
    assert logits.shape == (B * T, vocab_size)
    assert jnp.allclose(logits, ref_logits, atol=1e-5, rtol=1e-5)
    assert jnp.allclose(logits_nl.reshape(B * T, vocab_size), ref_logits,
                        atol=1e-5, rtol=1e-5)
    assert jnp.allclose(loss, ref_loss, atol=1e-4, rtol=1e-4)

    print("KERNEL_OK")
</pallas_src>

<mosaic_0001>
module attributes {stable_mosaic.version = 11 : i64} {
  func.func @probe_kernel(%arg0: i32, %arg1: memref<8x128xf32, #tpu.memory_space<vmem>>, %arg2: memref<8x128xf32, #tpu.memory_space<vmem>>) attributes {dimension_semantics = [#tpu.dimension_semantics<arbitrary>], iteration_bounds = array<i64: 2>, scalar_prefetch = 0 : i64, scratch_operands = 0 : i64, tpu.core_type = #tpu.core_type<tc>, window_params = [{pipeline_mode = #tpu.pipeline_mode<synchronous>, transform_indices = @transform_0, window_bounds = array<i64: 8, 128>}, {transform_indices = @transform_1, window_bounds = array<i64: 8, 128>}]} {
    %c0 = arith.constant 0 : index
    %c0_0 = arith.constant 0 : index
    %0 = vector.load %arg1[%c0, %c0_0] : memref<8x128xf32, #tpu.memory_space<vmem>>, vector<8x128xf32>
    %1 = arith.sitofp %arg0 : i32 to f32
    %2 = vector.broadcast %1 : f32 to vector<8x128xf32>
    %3 = arith.addf %0, %2 : vector<8x128xf32>
    %c0_1 = arith.constant 0 : index
    %c0_2 = arith.constant 0 : index
    %4 = vector.load %arg2[%c0_1, %c0_2] : memref<8x128xf32, #tpu.memory_space<vmem>>, vector<8x128xf32>
    tpu.vector_store %arg2[%c0_1, %c0_2], %3 {strides = array<i32>} : memref<8x128xf32, #tpu.memory_space<vmem>>, vector<8x128xf32>,
    return
  }
  func.func @transform_0(%arg0: i32) -> (i32, i32) {
    %c0_i32 = arith.constant 0 : i32
    %c0_i32_0 = arith.constant 0 : i32
    %c0_i32_1 = arith.constant 0 : i32
    return %c0_i32, %c0_i32_0 : i32, i32
  }
  func.func @transform_1(%arg0: i32) -> (i32, i32) {
    %c0_i32 = arith.constant 0 : i32
    %c0_i32_0 = arith.constant 0 : i32
    return %arg0, %c0_i32 : i32, i32
  }
}

module attributes {stable_mosaic.version = 11 : i64} {
  func.func @_logits_loss_kernel(%arg0: i32, %arg1: memref<16x1xi32, #tpu.memory_space<vmem>>, %arg2: memref<16x1xi32, #tpu.memory_space<vmem>>, %arg3: memref<128x128xf32, #tpu.memory_space<vmem>>, %arg4: memref<16x128xf32, #tpu.memory_space<vmem>>, %arg5: memref<16x1xf32, #tpu.memory_space<vmem>>) attributes {dimension_semantics = [#tpu.dimension_semantics<parallel>], iteration_bounds = array<i64: 1>, scalar_prefetch = 0 : i64, scratch_operands = 0 : i64, tpu.core_type = #tpu.core_type<tc>, window_params = [{transform_indices = @transform_0, window_bounds = array<i64: 16, 1>}, {transform_indices = @transform_1, window_bounds = array<i64: 16, 1>}, {pipeline_mode = #tpu.pipeline_mode<synchronous>, transform_indices = @transform_2, window_bounds = array<i64: 128, 128>}, {transform_indices = @transform_3, window_bounds = array<i64: 16, 128>}, {transform_indices = @transform_4, window_bounds = array<i64: 16, 1>}]} {
    %0 = tpu.iota {dimensions = array<i32: 1>} : vector<16x128xi32>
    %c0 = arith.constant 0 : index
    %c0_0 = arith.constant 0 : index
    %1 = vector.load %arg1[%c0, %c0_0] : memref<16x1xi32, #tpu.memory_space<vmem>>, vector<16x1xi32>
    %2 = vector.broadcast %1 : vector<16x1xi32> to vector<16x128xi32>
    %3 = arith.cmpi eq, %0, %2 : vector<16x128xi32>
    %4 = arith.extui %3 : vector<16x128xi1> to vector<16x128xi32>
    %5 = arith.sitofp %4 : vector<16x128xi32> to vector<16x128xf32>
    %c0_1 = arith.constant 0 : index
    %c0_2 = arith.constant 0 : index
    %6 = vector.load %arg3[%c0_1, %c0_2] : memref<128x128xf32, #tpu.memory_space<vmem>>, vector<128x128xf32>
    %cst = arith.constant dense<0.000000e+00> : vector<16x128xf32>
    %7 = tpu.matmul %5, %6, %cst {dimension_numbers = #tpu.dot_dimension_numbers<[1], [0], [0], [1], [0, 0, 1, 1], [], []>} : vector<16x128xf32>, vector<128x128xf32>, vector<16x128xf32> -> vector<16x128xf32>
    %c0_3 = arith.constant 0 : index
    %c0_4 = arith.constant 0 : index
    %8 = vector.load %arg4[%c0_3, %c0_4] : memref<16x128xf32, #tpu.memory_space<vmem>>, vector<16x128xf32>
    tpu.vector_store %arg4[%c0_3, %c0_4], %7 {strides = array<i32>} : memref<16x128xf32, #tpu.memory_space<vmem>>, vector<16x128xf32>,
    %c64_i32 = arith.constant 64 : i32
    %9 = vector.broadcast %c64_i32 : i32 to vector<16x128xi32>
    %10 = arith.cmpi slt, %0, %9 : vector<16x128xi32>
    %cst_5 = arith.constant -1.000000e+30 : f32
    %11 = vector.broadcast %cst_5 : f32 to vector<16x128xf32>
    %12 = arith.select %10, %7, %11 : vector<16x128xi1>, vector<16x128xf32>
    %cst_6 = arith.constant dense<0xFF800000> : vector<16xf32>
    %13 = vector.multi_reduction <maximumf>, %12, %cst_6 [1] : vector<16x128xf32> to vector<16xf32>
    %14 = vector.shape_cast %13 : vector<16xf32> to vector<16x1xf32>
    %15 = vector.broadcast %14 : vector<16x1xf32> to vector<16x128xf32>
    %16 = arith.subf %12, %15 : vector<16x128xf32>
    %17 = math.exp %16 : vector<16x128xf32>
    %cst_7 = arith.constant dense<0.000000e+00> : vector<16xf32>
    %18 = vector.multi_reduction <add>, %17, %cst_7 [1] : vector<16x128xf32> to vector<16xf32>
    %19 = vector.shape_cast %18 : vector<16xf32> to vector<16x1xf32>
    %20 = math.log %19 : vector<16x1xf32>
    %21 = arith.addf %20, %14 : vector<16x1xf32>
    %c0_8 = arith.constant 0 : index
    %c0_9 = arith.constant 0 : index
    %22 = vector.load %arg2[%c0_8, %c0_9] : memref<16x1xi32, #tpu.memory_space<vmem>>, vector<16x1xi32>
    %23 = vector.broadcast %22 : vector<16x1xi32> to vector<16x128xi32>
    %24 = arith.cmpi eq, %0, %23 : vector<16x128xi32>
    %cst_10 = arith.constant 0.000000e+00 : f32
    %25 = vector.broadcast %cst_10 : f32 to vector<16x128xf32>
    %26 = arith.select %24, %7, %25 : vector<16x128xi1>, vector<16x128xf32>
    %cst_11 = arith.constant dense<0.000000e+00> : vector<16xf32>
    %27 = vector.multi_reduction <add>, %26, %cst_11 [1] : vector<16x128xf32> to vector<16xf32>
    %28 = vector.shape_cast %27 : vector<16xf32> to vector<16x1xf32>
    %29 = arith.subf %21, %28 : vector<16x1xf32>
    %c0_12 = arith.constant 0 : index
    %c0_13 = arith.constant 0 : index
    %30 = vector.load %arg5[%c0_12, %c0_13] : memref<16x1xf32, #tpu.memory_space<vmem>>, vector<16x1xf32>
    tpu.vector_store %arg5[%c0_12, %c0_13], %29 {strides = array<i32>} : memref<16x1xf32, #tpu.memory_space<vmem>>, vector<16x1xf32>,
    return
  }
  func.func @transform_0(%arg0: i32) -> (i32, i32) {
    %c0_i32 = arith.constant 0 : i32
    %c0_i32_0 = arith.constant 0 : i32
    return %arg0, %c0_i32 : i32, i32
  }
  func.func @transform_1(%arg0: i32) -> (i32, i32) {
    %c0_i32 = arith.constant 0 : i32
    %c0_i32_0 = arith.constant 0 : i32
    return %arg0, %c0_i32 : i32, i32
  }
  func.func @transform_2(%arg0: i32) -> (i32, i32) {
    %c0_i32 = arith.constant 0 : i32
    %c0_i32_0 = arith.constant 0 : i32
    %c0_i32_1 = arith.constant 0 : i32
    return %c0_i32, %c0_i32_0 : i32, i32
  }
  func.func @transform_3(%arg0: i32) -> (i32, i32) {
    %c0_i32 = arith.constant 0 : i32
    %c0_i32_0 = arith.constant 0 : i32
    return %arg0, %c0_i32 : i32, i32
  }
  func.func @transform_4(%arg0: i32) -> (i32, i32) {
    %c0_i32 = arith.constant 0 : i32
    %c0_i32_0 = arith.constant 0 : i32
    return %arg0, %c0_i32 : i32, i32
  }
}

</mosaic_0001>

<llo_original>
// kernel: tpu_custom_call.1
$region0: #{tpu_custom_call.1}
  #allocation0 [shape = 'u32[]', space=smem, size = 0x4, offset = 0x4, fixed_abs, tag = 'smem constant byte address 0x4 - core index']
  #allocation1 [shape = 'u32[144,128]{1,0:T(1,128)}', space=vmem, size = 0x12000, scoped, tag = 'internal scratch']
  %s0 = inlined_call_operand.hbm [shape: f32[8,128], index: 0, kind: input, shape index: {}]
  %s1 = inlined_call_operand.hbm [shape: f32[16,128], index: 1, kind: output, shape index: {}]
  %s2 = sld [smem:[#allocation0]]
  $region41: #{tpu_custom_call.1} parent=0
    _
  %s4 = ssub.s32 1, %s2
  %s5 = scalar_select 0, %s4, %s2
  $region1: #{tpu_custom_call.1} parent=0
    #allocation2 [shape = 'u8[4096]{0}', space=vmem, size = 0x1000, scoped, tag = 'input window, operand 0, single buffered']
    #allocation3 [shape = 's32[2]{0}', space=sflag, size = 0x8, scoped, tag = 'scoped memory for tpu_custom_call.1']
    #allocation4 [shape = 's32[2]{0}', space=sflag, size = 0x8, scoped, tag = 'scoped memory for tpu_custom_call.1']
    #allocation5 [shape = 'u8[8192]{0}', space=vmem, size = 0x2000, scoped, tag = 'output window, operand 0']
    %6 = vsyncpa [#allocation3], 0
    %7 = vsyncpa [#allocation4], 0
    %s8 = scalar_lea.sflag [#allocation4], 1
    %9 = vsyncpa %s8, 0
    loop: start=0, step=1, limit=4
    $region2: #{tpu_custom_call.1} parent=1 // loop_pre_header
      _
    $region3: #{tpu_custom_call.1} parent=1 // loop_header
      %s11 = sphi 0, %s15
      %p12 = scmp.ge.s32.totalorder %s11, 4
      %s19 = sphi 0, %s19
      %s21 = sphi 0, %s19
      %s22 = sphi 0, %s21
      %s36 = sphi 0, %s22
      %s42 = sphi 0, %s44
      %s45 = sphi 0, %s42
      %s46 = sphi 0, %s45
      %s62 = sphi 0, %s46
    $region4: #{tpu_custom_call.1} parent=1 // loop_header_branch
      %14 = sbr.rel (%p12) target = $region8
    $region5: #{tpu_custom_call.1} parent=1 // loop_body
      %s16 = ssub.s32 %s11, 1
      %s17 = ssub.s32 %s11, 2
      %s18 = sadd.s32 %s11, 1
      %s20 = sadd.s32 %s19, 1
      %p23 = scmp.eq.s32.totalorder %s11, 1
      %p24 = scmp.ne.s32.totalorder %s19, %s21
      %p25 = scmp.eq.s32.totalorder %s11, 0
      %p26 = por %p24, %p25
      %p27 = scmp.ne.s32.totalorder %s19, %s21
      %p28 = scmp.eq.s32.totalorder %s16, 1
      %p29 = por %p27, %p28
      %p30 = scmp.ne.s32.totalorder %s21, %s22
      %p31 = scmp.eq.s32.totalorder %s16, 0
      %p32 = por %p30, %p31
      %p33 = scmp.ne.s32.totalorder %s21, %s22
      %p34 = scmp.eq.s32.totalorder %s17, 1
      %p35 = por %p33, %p34
      %p37 = scmp.ne.s32.totalorder %s22, %s36
      %p38 = scmp.eq.s32.totalorder %s17, 0
      %p39 = por %p37, %p38
      %s40 = ssub.s32 %s11, %s18
      %p41 = scmp.eq.s32.totalorder %s40, 0
      %s43 = sadd.s32 %s42, 1
      %s44 = scalar_select %p41, %s42, %s43
      %p47 = pneg %p41
      %p48 = scmp.eq.s32.totalorder %s11, 1
      %p49 = por %p47, %p48
      %p50 = scmp.ne.s32.totalorder %s42, %s45
      %p51 = scmp.eq.s32.totalorder %s11, 0
      %p52 = por %p50, %p51
      %p53 = scmp.ne.s32.totalorder %s42, %s45
      %p54 = scmp.eq.s32.totalorder %s16, 1
      %p55 = por %p53, %p54
      %p56 = scmp.ne.s32.totalorder %s45, %s46
      %p57 = scmp.eq.s32.totalorder %s16, 0
      %p58 = por %p56, %p57
      %p59 = scmp.ne.s32.totalorder %s45, %s46
      %p60 = scmp.eq.s32.totalorder %s17, 1
      %p61 = por %p59, %p60
      %p63 = scmp.ne.s32.totalorder %s46, %s62
      %p64 = scmp.eq.s32.totalorder %s17, 0
      %p65 = por %p63, %p64
      %p66 = scmp.le.s32.totalorder 1, %s11
      %p67 = scmp.lt.s32.totalorder %s11, 3
      %p68 = pnand %p66, %p67
      %p69 = pneg %p68
      // Predicated region
      $region9: #{tpu_custom_call.1} parent=5 // pred_check
        _
      $region10: #{tpu_custom_call.1} parent=5 // pred_check_branch
        %71 = sbr.rel (%p68) target = $region12
      $region11: #{tpu_custom_call.1} parent=5 // pred_region
        %s72 = ssub.s32 %s11, 1
        // Predicated region
        $region13: #{tpu_custom_call.1} parent=11 // pred_check
          %p73 = pneg %p32
        $region14: #{tpu_custom_call.1} parent=11 // pred_check_branch
          %75 = sbr.rel (%p73) target = $region16
        $region15: #{tpu_custom_call.1} parent=11 // pred_region
          %s77 = ssub.s32 128, 128
          %78 = vsyncadd [#allocation3], %s77
          %s80 = sshll.u32 [#allocation2], 4
          %s81 = int_to_ptr.vmem [resolvable:$true] %s80
          %83 = dma.hbm_to_vmem [thread:$0]  %s0, 128, %s81, [#allocation3]
        $region16: #{tpu_custom_call.1} parent=11 // pred_fallthru
          _
      $region12: #{tpu_custom_call.1} parent=5 // pred_fallthru
        _
      %p84 = scmp.lt.s32.totalorder %s11, 2
      // Predicated region
      $region17: #{tpu_custom_call.1} parent=5 // pred_check
        %p85 = pneg %p84
      $region18: #{tpu_custom_call.1} parent=5 // pred_check_branch
        %87 = sbr.rel (%p85) target = $region20
      $region19: #{tpu_custom_call.1} parent=5 // pred_region
        _
      $region20: #{tpu_custom_call.1} parent=5 // pred_fallthru
        _
      %p88 = scmp.le.s32.totalorder 1, %s11
      %p89 = scmp.lt.s32.totalorder %s11, 3
      %p90 = pnand %p88, %p89
      %p91 = pneg %p90
      // Predicated region
      $region21: #{tpu_custom_call.1} parent=5 // pred_check
        _
      $region22: #{tpu_custom_call.1} parent=5 // pred_check_branch
        %93 = sbr.rel (%p90) target = $region24
      $region23: #{tpu_custom_call.1} parent=5 // pred_region
        %s94 = ssub.s32 %s11, 1
        // Predicated region
        $region25: #{tpu_custom_call.1} parent=23 // pred_check
          %p95 = pneg %p32
        $region26: #{tpu_custom_call.1} parent=23 // pred_check_branch
          %97 = sbr.rel (%p95) target = $region28
        $region27: #{tpu_custom_call.1} parent=23 // pred_region
          %98 = dma.done [#allocation3], 128
        $region28: #{tpu_custom_call.1} parent=23 // pred_fallthru
          _
        %p99 = pneg %p32
        %p100 = pneg %p29
        %p101 = pneg %p58
        %p102 = pneg %p55
        %s103 = sand.u32 %s45, 1
        %s104 = scalar_lea.sflag [#allocation4], %s103
        %s105 = sand.u32 %s45, 1
        %s106 = smul.addr %s105, 8
        %s107 = scalar_lea.vmem [#allocation5], %s106
        %v108 = vld [vmem:[#allocation2] sm:$0xff]
        %s109 = scvt.s32.f32 %s16
        %v110 = vstv %s109
        %v111 = vadd.f32 %v108, %v110
        %112 = vst [vmem:[%s107] sm:$0xff] %v111
        %s113 = sand.u32 %s45, 1
        %s114 = scalar_lea.sflag [#allocation4], %s113
        %s115 = sand.u32 %s45, 1
        %s116 = smul.addr %s115, 8
        %s117 = scalar_lea.vmem [#allocation5], %s116
        // Predicated region
        $region29: #{tpu_custom_call.1} parent=23 // pred_check
          %p118 = pneg %p55
        $region30: #{tpu_custom_call.1} parent=23 // pred_check_branch
          %120 = sbr.rel (%p118) target = $region32
        $region31: #{tpu_custom_call.1} parent=23 // pred_region
          %s122 = ssub.s32 128, 128
          %123 = vsyncadd %s114, %s122
          %s124 = smul.addr %s16, 128
          %s125 = scalar_lea.hbm %s1, %s124
          %s127 = sshll.u32 %s117, 4
          %s128 = int_to_ptr.vmem [resolvable:$true] %s127
          %130 = dma.vmem_to_hbm [thread:$0]  %s128, 128, %s125, %s114
        $region32: #{tpu_custom_call.1} parent=23 // pred_fallthru
          _
      $region24: #{tpu_custom_call.1} parent=5 // pred_fallthru
        _
      %p131 = scmp.le.s32.totalorder 2, %s11
      // Predicated region
      $region33: #{tpu_custom_call.1} parent=5 // pred_check
        %p132 = pneg %p131
      $region34: #{tpu_custom_call.1} parent=5 // pred_check_branch
        %134 = sbr.rel (%p132) target = $region36
      $region35: #{tpu_custom_call.1} parent=5 // pred_region
        %s135 = ssub.s32 %s11, 2
        // Predicated region
        $region37: #{tpu_custom_call.1} parent=35 // pred_check
          %p136 = pneg %p61
        $region38: #{tpu_custom_call.1} parent=35 // pred_check_branch
          %138 = sbr.rel (%p136) target = $region40
        $region39: #{tpu_custom_call.1} parent=35 // pred_region
          %s139 = sand.u32 %s46, 1
          %s140 = scalar_lea.sflag [#allocation4], %s139
          %s141 = sand.u32 %s46, 1
          %s142 = smul.addr %s141, 8
          %s143 = scalar_lea.vmem [#allocation5], %s142
          %144 = dma.done %s140, 128
        $region40: #{tpu_custom_call.1} parent=35 // pred_fallthru
          _
      $region36: #{tpu_custom_call.1} parent=5 // pred_fallthru
        _
    $region6: #{tpu_custom_call.1} parent=1 // loop_footer
      %s15 = sadd.s32 1, %s11
    $region7: #{tpu_custom_call.1} parent=1 // loop_footer_branch
      %10 = sbr.rel target = $region3
    $region8: #{tpu_custom_call.1} parent=1 // loop_exit
      _
    %145 = vsyncpa [#allocation3], 1
    %s146 = scalar_lea.sflag [#allocation3], 1
    %147 = vsyncpa %s146, 1
    %148 = vsyncpa [#allocation4], 1
    %s149 = scalar_lea.sflag [#allocation4], 1
    %150 = vsyncpa %s149, 1

// kernel: _ilm_logits_loss.1
$region0: #{_ilm_logits_loss.1}
  #allocation0 [shape = 'u32[]', space=smem, size = 0x4, offset = 0x4, fixed_abs, tag = 'smem constant byte address 0x4 - core index']
  #allocation1 [shape = 'u32[144,128]{1,0:T(1,128)}', space=vmem, size = 0x12000, scoped, tag = 'internal scratch']
  %s0 = inlined_call_operand.vmem [shape: s32[16,1], index: 0, kind: input, shape index: {}]
  %s1 = inlined_call_operand.vmem [shape: s32[16,1], index: 1, kind: input, shape index: {}]
  %s2 = inlined_call_operand.hbm [shape: f32[128,128], index: 2, kind: input, shape index: {}]
  %s3 = inlined_call_operand.hbm [shape: f32[16,128], index: 3, kind: output, shape index: {0}]
  %s4 = inlined_call_operand.vmem [shape: f32[16,1], index: 4, kind: output, shape index: {1}]
  %5 = xla_tuple %s3, %s4
  %s6 = sld [smem:[#allocation0]]
  $region34: #{_ilm_logits_loss.1} parent=0
    _
  %s8 = ssub.s32 1, %s6
  %s9 = scalar_select 0, %s8, %s6
  $region1: #{_ilm_logits_loss.1} parent=0
    #allocation2 [shape = 'u8[65536]{0}', space=vmem, size = 0x10000, scoped, tag = 'input window, operand 2, single buffered']
    #allocation3 [shape = 's32[1]{0}', space=sflag, size = 0x4, scoped, tag = 'scoped memory for _ilm_logits_loss.1']
    #allocation4 [shape = 's32[1]{0}', space=sflag, size = 0x4, scoped, tag = 'scoped memory for _ilm_logits_loss.1']
    #allocation5 [shape = 'u8[8192]{0}', space=vmem, size = 0x2000, scoped, tag = 'output window, operand 0, single buffered']
    %10 = vsyncpa [#allocation3], 0
    %11 = vsyncpa [#allocation4], 0
    // Predicated region
    $region2: #{_ilm_logits_loss.1} parent=1 // pred_check
      _
    $region3: #{_ilm_logits_loss.1} parent=1 // pred_check_branch
      %13 = sbr.rel (0) target = $region5
    $region4: #{_ilm_logits_loss.1} parent=1 // pred_region
      _
    $region5: #{_ilm_logits_loss.1} parent=1 // pred_fallthru
      _
    // Predicated region
    $region6: #{_ilm_logits_loss.1} parent=1 // pred_check
      _
    $region7: #{_ilm_logits_loss.1} parent=1 // pred_check_branch
      %15 = sbr.rel (0) target = $region9
    $region8: #{_ilm_logits_loss.1} parent=1 // pred_region
      _
    $region9: #{_ilm_logits_loss.1} parent=1 // pred_fallthru
      _
    // Predicated region
    $region10: #{_ilm_logits_loss.1} parent=1 // pred_check
      _
    $region11: #{_ilm_logits_loss.1} parent=1 // pred_check_branch
      %17 = sbr.rel (0) target = $region13
    $region12: #{_ilm_logits_loss.1} parent=1 // pred_region
      %s19 = ssub.s32 2048, 2048
      %20 = vsyncadd [#allocation3], %s19
      %s21 = sshll.u32 [#allocation2], 4
      %s22 = int_to_ptr.vmem [resolvable:$true] %s21
      %27 = dma.hbm_to_vmem [thread:$0]  %s2, 2048, %s22, [#allocation3], 128, 128, 8
    $region13: #{_ilm_logits_loss.1} parent=1 // pred_fallthru
      _
    // Predicated region
    $region14: #{_ilm_logits_loss.1} parent=1 // pred_check
      _
    $region15: #{_ilm_logits_loss.1} parent=1 // pred_check_branch
      %29 = sbr.rel (0) target = $region17
    $region16: #{_ilm_logits_loss.1} parent=1 // pred_region
      %30 = dma.done [#allocation3], 2048
    $region17: #{_ilm_logits_loss.1} parent=1 // pred_fallthru
      _
    %v31 = vlaneseq
    %v32 = vand.u32 %v31, 127
    %v33 = vld [vmem:[%s0] sm:$0xff]
    %v34 = vld [vmem:[%s0 + $0x8] sm:$0xff]
    %35 = vset.pattern.permute.xlu0 0
    %36 = vperm.xlu0 %35, %v33
    %v37 = vpop.permute.xlu0 %36
    %38 = vset.pattern.permute.xlu0 0
    %39 = vperm.xlu0 %38, %v34
    %v40 = vpop.permute.xlu0 %39
    %vm41 = vcmp.eq.s32.totalorder %v32, %v37
    %vm42 = vcmp.eq.s32.totalorder %v32, %v40
    %v43 = vsel %vm41, 1, 0
    %v44 = vsel %vm42, 1, 0
    %v45 = vcvt.s32.f32 %v43
    %v46 = vcvt.s32.f32 %v44
    %v47 = vld [vmem:[#allocation2] sm:$0xff]
    %v48 = vld [vmem:[#allocation2 + $0x8] sm:$0xff]
    %v49 = vld [vmem:[#allocation2 + $0x10] sm:$0xff]
    %v50 = vld [vmem:[#allocation2 + $0x18] sm:$0xff]
    %v51 = vld [vmem:[#allocation2 + $0x20] sm:$0xff]
    %v52 = vld [vmem:[#allocation2 + $0x28] sm:$0xff]
    %v53 = vld [vmem:[#allocation2 + $0x30] sm:$0xff]
    %v54 = vld [vmem:[#allocation2 + $0x38] sm:$0xff]
    %v55 = vld [vmem:[#allocation2 + $0x40] sm:$0xff]
    %v56 = vld [vmem:[#allocation2 + $0x48] sm:$0xff]
    %v57 = vld [vmem:[#allocation2 + $0x50] sm:$0xff]
    %v58 = vld [vmem:[#allocation2 + $0x58] sm:$0xff]
    %v59 = vld [vmem:[#allocation2 + $0x60] sm:$0xff]
    %v60 = vld [vmem:[#allocation2 + $0x68] sm:$0xff]
    %v61 = vld [vmem:[#allocation2 + $0x70] sm:$0xff]
    %v62 = vld [vmem:[#allocation2 + $0x78] sm:$0xff]
    %63 = vmatprep.subr.mxu0 0.0
    %64 = vmatpush1.msra.mxu0 %v47
    %65 = vmatprep.subr.mxu0 0.0
    %66 = vmatpush1.msra.mxu0 %v48
    %67 = vmatprep.subr.mxu0 0.0
    %68 = vmatpush1.msra.mxu0 %v49
    %69 = vmatprep.subr.mxu0 0.0
    %70 = vmatpush1.msra.mxu0 %v50
    %71 = vmatprep.subr.mxu0 0.0
    %72 = vmatpush1.msra.mxu0 %v51
    %73 = vmatprep.subr.mxu0 0.0
    %74 = vmatpush1.msra.mxu0 %v52
    %75 = vmatprep.subr.mxu0 0.0
    %76 = vmatpush1.msra.mxu0 %v53
    %77 = vmatprep.subr.mxu0 0.0
    %78 = vmatpush1.msra.mxu0 %v54
    %79 = vmatprep.subr.mxu0 0.0
    %80 = vmatpush1.msra.mxu0 %v55
    %81 = vmatprep.subr.mxu0 0.0
    %82 = vmatpush1.msra.mxu0 %v56
    %83 = vmatprep.subr.mxu0 0.0
    %84 = vmatpush1.msra.mxu0 %v57
    %85 = vmatprep.subr.mxu0 0.0
    %86 = vmatpush1.msra.mxu0 %v58
    %87 = vmatprep.subr.mxu0 0.0
    %88 = vmatpush1.msra.mxu0 %v59
    %89 = vmatprep.subr.mxu0 0.0
    %90 = vmatpush1.msra.mxu0 %v60
    %91 = vmatprep.subr.mxu0 0.0
    %92 = vmatpush1.msra.mxu0 %v61
    %93 = vmatprep.subr.mxu0 0.0
    %94 = vmatpush1.msra.mxu0 %v62
    %95 = vmatprep.subr.mxu0 0.0
    %96 = vmatpush1.msra.mxu0 0.0
    %97 = vmatprep.subr.mxu0 0.0
    %98 = vmatpush1.msra.mxu0 0.0
    %99 = vmatprep.subr.mxu0 0.0
    %100 = vmatpush1.msra.mxu0 0.0
    %101 = vmatprep.subr.mxu0 0.0
    %102 = vmatpush1.msra.mxu0 0.0
    %103 = vmatprep.subr.mxu0 0.0
    %104 = vmatpush1.msra.mxu0 0.0
    %105 = vmatprep.subr.mxu0 0.0
    %106 = vmatpush1.msra.mxu0 0.0
    %107 = vmatprep.subr.mxu0 0.0
    %108 = vmatpush1.msra.mxu0 0.0
    %109 = vmatprep.subr.mxu0 0.0
    %110 = vmatpush1.msra.mxu0 0.0
    %111 = vmatprep.subr.mxu0 0.0
    %112 = vmatpush1.msra.mxu0 0.0
    %113 = vmatprep.subr.mxu0 0.0
    %114 = vmatpush1.msra.mxu0 0.0
    %115 = vmatprep.subr.mxu0 0.0
    %116 = vmatpush1.msra.mxu0 0.0
    %117 = vmatprep.subr.mxu0 0.0
    %118 = vmatpush1.msra.mxu0 0.0
    %119 = vmatprep.subr.mxu0 0.0
    %120 = vmatpush1.msra.mxu0 0.0
    %121 = vmatprep.subr.mxu0 0.0
    %122 = vmatpush1.msra.mxu0 0.0
    %123 = vmatprep.subr.mxu0 0.0
    %124 = vmatpush1.msra.mxu0 0.0
    %125 = vmatprep.subr.mxu0 0.0
    %126 = vmatpush1.msra.mxu0 0.0
    %127 = vmatprep.mubr.f32.mxu0 0.0
    %128 = vmatmul.mubr.f32.gmra.mrb[0].mxu0 %v45
    %v129 = vpop.f32.mrb[0].mxu0
    %v130 = vadd.f32 0.0, %v129
    %v131 = vpop.f32.mrb[0].mxu0
    %132 = vmatprep.mubr.f32.mxu0 0.0
    %133 = vmatmul.mubr.f32.gmra.mrb[0].mxu0 %v46
    %v134 = vpop.f32.mrb[0].mxu0
    %v135 = vadd.f32 0.0, %v134
    %v136 = vpop.f32.mrb[0].mxu0
    %137 = vdwg.mxu0
    %138 = vst [vmem:[#allocation5] sm:$0xff] %v130
    %139 = vst [vmem:[#allocation5 + $0x8] sm:$0xff] %v135
    %vm140 = vcmp.lt.s32.totalorder %v32, 64
    %v141 = vsel %vm140, %v130, -1e+30
    %v142 = vsel %vm140, %v135, -1e+30
    %143 = vmax.xlane.f32.xlu0 %v141
    %v144 = vpop.xlane.xlu0 %143
    %145 = vmax.xlane.f32.xlu0 %v142
    %v146 = vpop.xlane.xlu0 %145
    %v147 = vsub.f32 %v141, %v144
    %v148 = vsub.f32 %v142, %v146
    %v149 = vmul.f32 %v147, 1.442695
    %v150 = vpow.pop %v149
    %v151 = vmul.f32 %v148, 1.442695
    %v152 = vpow.pop %v151
    %153 = vadd.xlane.f32.xlu0 %v150
    %v154 = vpop.xlane.xlu0 %153
    %155 = vadd.xlane.f32.xlu0 %v152
    %v156 = vpop.xlane.xlu0 %155
    %v157 = vlog2.pop %v154
    %v158 = vmul.f32 %v157, 0.6931472
    %v159 = vlog2.pop %v156
    %v160 = vmul.f32 %v159, 0.6931472
    %v161 = vadd.f32 %v158, %v144
    %v162 = vadd.f32 %v160, %v146
    %v163 = vld [vmem:[%s1] sm:$0xff]
    %v164 = vld [vmem:[%s1 + $0x8] sm:$0xff]
    %165 = vset.pattern.permute.xlu0 0
    %166 = vperm.xlu0 %165, %v163
    %v167 = vpop.permute.xlu0 %166
    %168 = vset.pattern.permute.xlu0 0
    %169 = vperm.xlu0 %168, %v164
    %v170 = vpop.permute.xlu0 %169
    %vm171 = vcmp.eq.s32.totalorder %v32, %v167
    %vm172 = vcmp.eq.s32.totalorder %v32, %v170
    %v173 = vsel %vm171, %v130, 0.0
    %v174 = vsel %vm172, %v135, 0.0
    %175 = vadd.xlane.f32.xlu0 %v173
    %v176 = vpop.xlane.xlu0 %175
    %177 = vadd.xlane.f32.xlu0 %v174
    %v178 = vpop.xlane.xlu0 %177
    %v179 = vsub.f32 %v161, %v176
    %v180 = vsub.f32 %v162, %v178
    %vm181 = vcmask 7168
    %182 = vst.msk [vmem:[%s4] sm:$0xff] %vm181, %v179
    %183 = vst.msk [vmem:[%s4 + $0x8] sm:$0xff] %vm181, %v180
    // Predicated region
    $region18: #{_ilm_logits_loss.1} parent=1 // pred_check
      _
    $region19: #{_ilm_logits_loss.1} parent=1 // pred_check_branch
      %185 = sbr.rel (0) target = $region21
    $region20: #{_ilm_logits_loss.1} parent=1 // pred_region
      %s187 = ssub.s32 256, 256
      %188 = vsyncadd [#allocation4], %s187
      %s189 = sshll.u32 [#allocation5], 4
      %s190 = int_to_ptr.vmem [resolvable:$true] %s189
      %195 = dma.vmem_to_hbm [thread:$0]  %s190, 256, %s3, [#allocation4], 128, 128, 8
    $region21: #{_ilm_logits_loss.1} parent=1 // pred_fallthru
      _
    // Predicated region
    $region22: #{_ilm_logits_loss.1} parent=1 // pred_check
      _
    $region23: #{_ilm_logits_loss.1} parent=1 // pred_check_branch
      %197 = sbr.rel (0) target = $region25
    $region24: #{_ilm_logits_loss.1} parent=1 // pred_region
      _
    $region25: #{_ilm_logits_loss.1} parent=1 // pred_fallthru
      _
    // Predicated region
    $region26: #{_ilm_logits_loss.1} parent=1 // pred_check
      _
    $region27: #{_ilm_logits_loss.1} parent=1 // pred_check_branch
      %199 = sbr.rel (0) target = $region29
    $region28: #{_ilm_logits_loss.1} parent=1 // pred_region
      %200 = dma.done [#allocation4], 256
    $region29: #{_ilm_logits_loss.1} parent=1 // pred_fallthru
      _
    // Predicated region
    $region30: #{_ilm_logits_loss.1} parent=1 // pred_check
      _
    $region31: #{_ilm_logits_loss.1} parent=1 // pred_check_branch
      %202 = sbr.rel (0) target = $region33
    $region32: #{_ilm_logits_loss.1} parent=1 // pred_region
      _
    $region33: #{_ilm_logits_loss.1} parent=1 // pred_fallthru
      _
    %203 = vsyncpa [#allocation3], 1
    %204 = vsyncpa [#allocation4], 1

</llo_original>
